<compile_context>
chip_gen: v7x
topology: tpu7x:2x2x1
jax: 0.10.0
libtpu: 0.0.40
codegen_flags: <defaults>
</compile_context>

<pallas_src>
import functools
import math

import jax
import jax.numpy as jnp
from jax.experimental import pallas as pl
from jax.experimental.pallas import tpu as pltpu

EPS = 1e-5


def _patch_expand_kernel(x_ref, w_ref, g_ref, b_ref, o_ref, *, width):
    # x_ref: (TM, C)   w_ref: (C, 2C)   g/b: (1, C) f32   o_ref: (2*TM, C)
    tm, c = x_ref.shape
    ch = c // 2
    th = tm // width

    # One fused MXU matmul, f32 accumulation (bf16 x/w use the bf16 MXU path).
    y = jnp.dot(x_ref[...], w_ref[...], preferred_element_type=jnp.float32)  # (TM, 2C)

    g = g_ref[...]
    b = b_ref[...]

    def _norm_chunk(z):  # LayerNorm over one Ch-wide chunk, f32
        m = jnp.mean(z, axis=-1, keepdims=True)
        ez2 = jnp.mean(z * z, axis=-1, keepdims=True)
        v = jnp.maximum(ez2 - m * m, 0.0)        # E[z^2]-m^2: independent reductions
        return (z - m) * jax.lax.rsqrt(v + EPS)

    def _finish_half(yh):  # yh: (TM, C) = (p2=0 chunk | p2=1 chunk)
        n = jnp.concatenate([_norm_chunk(yh[:, :ch]), _norm_chunk(yh[:, ch:])],
                            axis=-1)                                   # (TM, C)
        return (n * g + b).astype(o_ref.dtype).reshape(th, 1, width, c)

    n0 = _finish_half(y[:, :c])     # p1 = 0 -> output image rows 2h
    n1 = _finish_half(y[:, c:])     # p1 = 1 -> output image rows 2h+1
    # Interleave the halves at W-row granularity; one dense lane-wide store.
    o_ref[...] = jnp.concatenate([n0, n1], axis=1).reshape(2 * tm, c)


def _vmem_capacity_bytes():
    try:
        cap = getattr(pltpu.get_tpu_info(), "vmem_capacity_bytes", None)
        if cap:
            return int(cap)
    except Exception:
        pass
    return 64 * 1024 * 1024          # conservative default (v7x per-TC VMEM)


def patch_expanding(x, w, gamma, beta, input_resolution, *, target_tokens=4096):
    """Swin-Unet PatchExpanding forward.

    x:     (B, L, C) with L = H*W        (token layout, like the nn.Module)
    w:     (C, 2C)   == PyTorch expand.weight.T  (Linear(dim, 2*dim, bias=False))
    gamma: (C//2,)   LayerNorm weight
    beta:  (C//2,)   LayerNorm bias
    returns (B, 4L, C//2) in x.dtype.
    """
    H, W = input_resolution
    B, L, C = x.shape
    assert L == H * W, "input feature has wrong size"
    assert C % 2 == 0
    Ch = C // 2
    BH = B * H
    dtype = x.dtype
    itemsize = jnp.dtype(dtype).itemsize

    # Weight in the compute dtype (bf16 x -> bf16 weight: intentional precision/
    # perf tradeoff; will not bit-match an f32 PyTorch reference).
    w = w.astype(dtype)

    # gamma/beta tiled over p2 -> one lane-dense (1, C) FMA in the epilogue.
    gamma_t = jnp.tile(gamma.astype(jnp.float32).reshape(1, Ch), (1, 2))
    beta_t = jnp.tile(beta.astype(jnp.float32).reshape(1, Ch), (1, 2))

    x2 = x.reshape(B * L, C)          # flat token-major: dense DMA / matmul LHS

    # ---- per-generation VMEM budget & tile selection ------------------------
    vmem_cap = _vmem_capacity_bytes()                          # 128 MiB v5e/v6e, 64 MiB v7x
    vmem_limit = max(32 << 20, min(3 * vmem_cap // 4, 100 << 20))
    vmem_budget = max(16 << 20, min(vmem_cap // 2, 64 << 20))

    def _vmem_est(tm):
        return (2 * tm * C * itemsize            # x block   (double buffered)
                + 2 * (2 * tm) * C * itemsize    # out block (double buffered)
                + 2 * C * (2 * C) * itemsize     # (C, 2C) weight (double buffered)
                + 3 * tm * (2 * C) * 4           # f32 matmul / LayerNorm temporaries
                + 4 * C * 4 + (512 << 10))       # gamma/beta + slack

    th = max(1, min(BH, target_tokens // W))
    while th > 1 and _vmem_est(th * W) > vmem_budget:
        th = max(1, th // 2)
    if BH >= 2:                       # >= 2 grid steps so both v7x TCs get work
        th = min(th, max(1, BH // 2))
    sub = 8 if itemsize >= 4 else (16 if itemsize == 2 else 32)
    g = sub // math.gcd(W, sub)       # th*W a multiple of the sublane tile
    if th >= g:
        th = (th // g) * g
    else:
        th = min(BH, g)               # tiny inputs: keep blocks row-aligned / full
    tm = th * W
    grid = (pl.cdiv(BH, th),)

    cost = pl.CostEstimate(
        flops=2 * B * L * C * (2 * C),
        transcendentals=4 * B * L,
        bytes_accessed=(B * L * C * itemsize + C * 2 * C * itemsize
                        + 2 * B * L * C * itemsize + 4 * C * 4),
    )

    kernel = functools.partial(_patch_expand_kernel, width=W)

    out = pl.pallas_call(
        kernel,
        out_shape=jax.ShapeDtypeStruct((2 * B * L, C), dtype),
        grid_spec=pltpu.PrefetchScalarGridSpec(
            num_scalar_prefetch=0,
            grid=grid,
            in_specs=[
                pl.BlockSpec((tm, C), lambda i: (i, 0)),
                pl.BlockSpec((C, 2 * C), lambda i: (0, 0)),
                pl.BlockSpec((1, C), lambda i: (0, 0)),
                pl.BlockSpec((1, C), lambda i: (0, 0)),
            ],
            out_specs=pl.BlockSpec((2 * tm, C), lambda i: (i, 0)),
        ),
        compiler_params=pltpu.CompilerParams(
            dimension_semantics=("parallel",),   # shards the row loop across v7x TCs
            vmem_limit_bytes=vmem_limit,
        ),
        cost_estimate=cost,
    )(x2, w, gamma_t, beta_t)

    # Rows of (2BL, C) are ordered (b, h, p1, w) with lanes (p2, c): a pure
    # reshape finishes 'b h w (p1 p2 c) -> b (h p1) (w p2) c' -- no transpose.
    return out.reshape(B, 4 * L, Ch)


def _reference(x, w, gamma, beta, input_resolution):
    H, W = input_resolution
    B, L, C = x.shape
    y = jnp.einsum("blc,cd->bld", x, w)          # (B, L, 2C)
    Ch = C // 2
    y = y.reshape(B, H, W, 2, 2, Ch).transpose(0, 1, 3, 2, 4, 5).reshape(B, 4 * L, Ch)
    mean = jnp.mean(y, axis=-1, keepdims=True)
    var = jnp.mean((y - mean) ** 2, axis=-1, keepdims=True)
    return (y - mean) * jax.lax.rsqrt(var + EPS) * gamma + beta


if __name__ == "__main__":
    key = jax.random.PRNGKey(0)
    k1, k2, k3, k4 = jax.random.split(key, 4)

    B = 2
    H = W = 8
    dim = 32
    L = H * W

    x = jax.random.normal(k1, (B, L, dim), dtype=jnp.float32)
    # nn.Linear(dim, 2*dim, bias=False): PyTorch weight is (2*dim, dim); we pass its transpose.
    w = jax.random.normal(k2, (dim, 2 * dim), dtype=jnp.float32) * 0.1
    gamma = 1.0 + 0.05 * jax.random.normal(k3, (dim // 2,), dtype=jnp.float32)
    beta = 0.05 * jax.random.normal(k4, (dim // 2,), dtype=jnp.float32)

    out = patch_expanding(x, w, gamma, beta, (H, W))
    out = jax.block_until_ready(out)

    ref = _reference(x, w, gamma, beta, (H, W))
    assert out.shape == (B, 4 * L, dim // 2)
    assert out.dtype == x.dtype
    assert jnp.allclose(out, ref, atol=2e-3, rtol=2e-3), "mismatch vs reference"

    print("KERNEL_OK")
</pallas_src>

<mosaic_0001>
module attributes {stable_mosaic.version = 11 : i64} {
  func.func @_patch_expand_kernel(%arg0: i32, %arg1: memref<64x32xf32, #tpu.memory_space<vmem>>, %arg2: memref<32x64xf32, #tpu.memory_space<vmem>>, %arg3: memref<1x32xf32, #tpu.memory_space<vmem>>, %arg4: memref<1x32xf32, #tpu.memory_space<vmem>>, %arg5: memref<128x32xf32, #tpu.memory_space<vmem>>) attributes {dimension_semantics = [#tpu.dimension_semantics<parallel>], iteration_bounds = array<i64: 2>, scalar_prefetch = 0 : i64, scratch_operands = 0 : i64, tpu.core_type = #tpu.core_type<tc>, window_params = [{transform_indices = @transform_0, window_bounds = array<i64: 64, 32>}, {pipeline_mode = #tpu.pipeline_mode<synchronous>, transform_indices = @transform_1, window_bounds = array<i64: 32, 64>}, {pipeline_mode = #tpu.pipeline_mode<synchronous>, transform_indices = @transform_2, window_bounds = array<i64: 1, 32>}, {pipeline_mode = #tpu.pipeline_mode<synchronous>, transform_indices = @transform_3, window_bounds = array<i64: 1, 32>}, {transform_indices = @transform_4, window_bounds = array<i64: 128, 32>}]} {
    %c0 = arith.constant 0 : index
    %c0_0 = arith.constant 0 : index
    %0 = vector.load %arg1[%c0, %c0_0] : memref<64x32xf32, #tpu.memory_space<vmem>>, vector<64x32xf32>
    %c0_1 = arith.constant 0 : index
    %c0_2 = arith.constant 0 : index
    %1 = vector.load %arg2[%c0_1, %c0_2] : memref<32x64xf32, #tpu.memory_space<vmem>>, vector<32x64xf32>
    %cst = arith.constant dense<0.000000e+00> : vector<64x64xf32>
    %2 = tpu.matmul %0, %1, %cst {dimension_numbers = #tpu.dot_dimension_numbers<[1], [0], [0], [1], [0, 0, 1, 1], [], []>} : vector<64x32xf32>, vector<32x64xf32>, vector<64x64xf32> -> vector<64x64xf32>
    %c0_3 = arith.constant 0 : index
    %c0_4 = arith.constant 0 : index
    %3 = vector.load %arg3[%c0_3, %c0_4] : memref<1x32xf32, #tpu.memory_space<vmem>>, vector<1x32xf32>
    %c0_5 = arith.constant 0 : index
    %c0_6 = arith.constant 0 : index
    %4 = vector.load %arg4[%c0_5, %c0_6] : memref<1x32xf32, #tpu.memory_space<vmem>>, vector<1x32xf32>
    %5 = vector.extract_strided_slice %2 {offsets = [0, 0], sizes = [64, 32], strides = [1, 1]} : vector<64x64xf32> to vector<64x32xf32>
    %6 = vector.extract_strided_slice %5 {offsets = [0, 0], sizes = [64, 16], strides = [1, 1]} : vector<64x32xf32> to vector<64x16xf32>
    %cst_7 = arith.constant dense<0.000000e+00> : vector<64xf32>
    %7 = vector.multi_reduction <add>, %6, %cst_7 [1] : vector<64x16xf32> to vector<64xf32>
    %8 = vector.shape_cast %7 : vector<64xf32> to vector<64x1xf32>
    %cst_8 = arith.constant 1.600000e+01 : f32
    %9 = vector.broadcast %cst_8 : f32 to vector<64x1xf32>
    %10 = arith.divf %8, %9 : vector<64x1xf32>
    %11 = arith.mulf %6, %6 : vector<64x16xf32>
    %cst_9 = arith.constant dense<0.000000e+00> : vector<64xf32>
    %12 = vector.multi_reduction <add>, %11, %cst_9 [1] : vector<64x16xf32> to vector<64xf32>
    %13 = vector.shape_cast %12 : vector<64xf32> to vector<64x1xf32>
    %cst_10 = arith.constant 1.600000e+01 : f32
    %14 = vector.broadcast %cst_10 : f32 to vector<64x1xf32>
    %15 = arith.divf %13, %14 : vector<64x1xf32>
    %16 = arith.mulf %10, %10 : vector<64x1xf32>
    %17 = arith.subf %15, %16 : vector<64x1xf32>
    %cst_11 = arith.constant 0.000000e+00 : f32
    %18 = vector.broadcast %cst_11 : f32 to vector<64x1xf32>
    %19 = arith.maximumf %17, %18 : vector<64x1xf32>
    %20 = vector.broadcast %10 : vector<64x1xf32> to vector<64x16xf32>
    %21 = arith.subf %6, %20 : vector<64x16xf32>
    %cst_12 = arith.constant 9.99999974E-6 : f32
    %22 = vector.broadcast %cst_12 : f32 to vector<64x1xf32>
    %23 = arith.addf %19, %22 : vector<64x1xf32>
    %24 = math.rsqrt %23 : vector<64x1xf32>
    %25 = vector.broadcast %24 : vector<64x1xf32> to vector<64x16xf32>
    %26 = arith.mulf %21, %25 : vector<64x16xf32>
    %27 = vector.extract_strided_slice %5 {offsets = [0, 16], sizes = [64, 16], strides = [1, 1]} : vector<64x32xf32> to vector<64x16xf32>
    %cst_13 = arith.constant dense<0.000000e+00> : vector<64xf32>
    %28 = vector.multi_reduction <add>, %27, %cst_13 [1] : vector<64x16xf32> to vector<64xf32>
    %29 = vector.shape_cast %28 : vector<64xf32> to vector<64x1xf32>
    %cst_14 = arith.constant 1.600000e+01 : f32
    %30 = vector.broadcast %cst_14 : f32 to vector<64x1xf32>
    %31 = arith.divf %29, %30 : vector<64x1xf32>
    %32 = arith.mulf %27, %27 : vector<64x16xf32>
    %cst_15 = arith.constant dense<0.000000e+00> : vector<64xf32>
    %33 = vector.multi_reduction <add>, %32, %cst_15 [1] : vector<64x16xf32> to vector<64xf32>
    %34 = vector.shape_cast %33 : vector<64xf32> to vector<64x1xf32>
    %cst_16 = arith.constant 1.600000e+01 : f32
    %35 = vector.broadcast %cst_16 : f32 to vector<64x1xf32>
    %36 = arith.divf %34, %35 : vector<64x1xf32>
    %37 = arith.mulf %31, %31 : vector<64x1xf32>
    %38 = arith.subf %36, %37 : vector<64x1xf32>
    %cst_17 = arith.constant 0.000000e+00 : f32
    %39 = vector.broadcast %cst_17 : f32 to vector<64x1xf32>
    %40 = arith.maximumf %38, %39 : vector<64x1xf32>
    %41 = vector.broadcast %31 : vector<64x1xf32> to vector<64x16xf32>
    %42 = arith.subf %27, %41 : vector<64x16xf32>
    %cst_18 = arith.constant 9.99999974E-6 : f32
    %43 = vector.broadcast %cst_18 : f32 to vector<64x1xf32>
    %44 = arith.addf %40, %43 : vector<64x1xf32>
    %45 = math.rsqrt %44 : vector<64x1xf32>
    %46 = vector.broadcast %45 : vector<64x1xf32> to vector<64x16xf32>
    %47 = arith.mulf %42, %46 : vector<64x16xf32>
    %48 = tpu.concatenate %26, %47 in 1 : vector<64x16xf32>, vector<64x16xf32> -> vector<64x32xf32>
    %49 = vector.broadcast %3 : vector<1x32xf32> to vector<64x32xf32>
    %50 = arith.mulf %48, %49 : vector<64x32xf32>
    %51 = vector.broadcast %4 : vector<1x32xf32> to vector<64x32xf32>
    %52 = arith.addf %50, %51 : vector<64x32xf32>
    %53 = vector.shape_cast %52 : vector<64x32xf32> to vector<8x1x8x32xf32>
    %54 = vector.extract_strided_slice %2 {offsets = [0, 32], sizes = [64, 32], strides = [1, 1]} : vector<64x64xf32> to vector<64x32xf32>
    %55 = vector.extract_strided_slice %54 {offsets = [0, 0], sizes = [64, 16], strides = [1, 1]} : vector<64x32xf32> to vector<64x16xf32>
    %cst_19 = arith.constant dense<0.000000e+00> : vector<64xf32>
    %56 = vector.multi_reduction <add>, %55, %cst_19 [1] : vector<64x16xf32> to vector<64xf32>
    %57 = vector.shape_cast %56 : vector<64xf32> to vector<64x1xf32>
    %cst_20 = arith.constant 1.600000e+01 : f32
    %58 = vector.broadcast %cst_20 : f32 to vector<64x1xf32>
    %59 = arith.divf %57, %58 : vector<64x1xf32>
    %60 = arith.mulf %55, %55 : vector<64x16xf32>
    %cst_21 = arith.constant dense<0.000000e+00> : vector<64xf32>
    %61 = vector.multi_reduction <add>, %60, %cst_21 [1] : vector<64x16xf32> to vector<64xf32>
    %62 = vector.shape_cast %61 : vector<64xf32> to vector<64x1xf32>
    %cst_22 = arith.constant 1.600000e+01 : f32
    %63 = vector.broadcast %cst_22 : f32 to vector<64x1xf32>
    %64 = arith.divf %62, %63 : vector<64x1xf32>
    %65 = arith.mulf %59, %59 : vector<64x1xf32>
    %66 = arith.subf %64, %65 : vector<64x1xf32>
    %cst_23 = arith.constant 0.000000e+00 : f32
    %67 = vector.broadcast %cst_23 : f32 to vector<64x1xf32>
    %68 = arith.maximumf %66, %67 : vector<64x1xf32>
    %69 = vector.broadcast %59 : vector<64x1xf32> to vector<64x16xf32>
    %70 = arith.subf %55, %69 : vector<64x16xf32>
    %cst_24 = arith.constant 9.99999974E-6 : f32
    %71 = vector.broadcast %cst_24 : f32 to vector<64x1xf32>
    %72 = arith.addf %68, %71 : vector<64x1xf32>
    %73 = math.rsqrt %72 : vector<64x1xf32>
    %74 = vector.broadcast %73 : vector<64x1xf32> to vector<64x16xf32>
    %75 = arith.mulf %70, %74 : vector<64x16xf32>
    %76 = vector.extract_strided_slice %54 {offsets = [0, 16], sizes = [64, 16], strides = [1, 1]} : vector<64x32xf32> to vector<64x16xf32>
    %cst_25 = arith.constant dense<0.000000e+00> : vector<64xf32>
    %77 = vector.multi_reduction <add>, %76, %cst_25 [1] : vector<64x16xf32> to vector<64xf32>
    %78 = vector.shape_cast %77 : vector<64xf32> to vector<64x1xf32>
    %cst_26 = arith.constant 1.600000e+01 : f32
    %79 = vector.broadcast %cst_26 : f32 to vector<64x1xf32>
    %80 = arith.divf %78, %79 : vector<64x1xf32>
    %81 = arith.mulf %76, %76 : vector<64x16xf32>
    %cst_27 = arith.constant dense<0.000000e+00> : vector<64xf32>
    %82 = vector.multi_reduction <add>, %81, %cst_27 [1] : vector<64x16xf32> to vector<64xf32>
    %83 = vector.shape_cast %82 : vector<64xf32> to vector<64x1xf32>
    %cst_28 = arith.constant 1.600000e+01 : f32
    %84 = vector.broadcast %cst_28 : f32 to vector<64x1xf32>
    %85 = arith.divf %83, %84 : vector<64x1xf32>
    %86 = arith.mulf %80, %80 : vector<64x1xf32>
    %87 = arith.subf %85, %86 : vector<64x1xf32>
    %cst_29 = arith.constant 0.000000e+00 : f32
    %88 = vector.broadcast %cst_29 : f32 to vector<64x1xf32>
    %89 = arith.maximumf %87, %88 : vector<64x1xf32>
    %90 = vector.broadcast %80 : vector<64x1xf32> to vector<64x16xf32>
    %91 = arith.subf %76, %90 : vector<64x16xf32>
    %cst_30 = arith.constant 9.99999974E-6 : f32
    %92 = vector.broadcast %cst_30 : f32 to vector<64x1xf32>
    %93 = arith.addf %89, %92 : vector<64x1xf32>
    %94 = math.rsqrt %93 : vector<64x1xf32>
    %95 = vector.broadcast %94 : vector<64x1xf32> to vector<64x16xf32>
    %96 = arith.mulf %91, %95 : vector<64x16xf32>
    %97 = tpu.concatenate %75, %96 in 1 : vector<64x16xf32>, vector<64x16xf32> -> vector<64x32xf32>
    %98 = vector.broadcast %3 : vector<1x32xf32> to vector<64x32xf32>
    %99 = arith.mulf %97, %98 : vector<64x32xf32>
    %100 = vector.broadcast %4 : vector<1x32xf32> to vector<64x32xf32>
    %101 = arith.addf %99, %100 : vector<64x32xf32>
    %102 = vector.shape_cast %101 : vector<64x32xf32> to vector<8x1x8x32xf32>
    %103 = tpu.concatenate %53, %102 in 1 : vector<8x1x8x32xf32>, vector<8x1x8x32xf32> -> vector<8x2x8x32xf32>
    %104 = vector.shape_cast %103 : vector<8x2x8x32xf32> to vector<128x32xf32>
    %c0_31 = arith.constant 0 : index
    %c0_32 = arith.constant 0 : index
    %105 = vector.load %arg5[%c0_31, %c0_32] : memref<128x32xf32, #tpu.memory_space<vmem>>, vector<128x32xf32>
    tpu.vector_store %arg5[%c0_31, %c0_32], %104 {strides = array<i32>} : memref<128x32xf32, #tpu.memory_space<vmem>>, vector<128x32xf32>,
    return
  }
  func.func @transform_0(%arg0: i32) -> (i32, i32) {
    %c0_i32 = arith.constant 0 : i32
    %c0_i32_0 = arith.constant 0 : i32
    return %arg0, %c0_i32 : i32, i32
  }
  func.func @transform_1(%arg0: i32) -> (i32, i32) {
    %c0_i32 = arith.constant 0 : i32
    %c0_i32_0 = arith.constant 0 : i32
    %c0_i32_1 = arith.constant 0 : i32
    return %c0_i32, %c0_i32_0 : i32, i32
  }
  func.func @transform_2(%arg0: i32) -> (i32, i32) {
    %c0_i32 = arith.constant 0 : i32
    %c0_i32_0 = arith.constant 0 : i32
    %c0_i32_1 = arith.constant 0 : i32
    return %c0_i32, %c0_i32_0 : i32, i32
  }
  func.func @transform_3(%arg0: i32) -> (i32, i32) {
    %c0_i32 = arith.constant 0 : i32
    %c0_i32_0 = arith.constant 0 : i32
    %c0_i32_1 = arith.constant 0 : i32
    return %c0_i32, %c0_i32_0 : i32, i32
  }
  func.func @transform_4(%arg0: i32) -> (i32, i32) {
    %c0_i32 = arith.constant 0 : i32
    %c0_i32_0 = arith.constant 0 : i32
    return %arg0, %c0_i32 : i32, i32
  }
}

</mosaic_0001>

<llo_original>
// kernel: tpu_custom_call.1
$region0: #{tpu_custom_call.1}
  #allocation0 [shape = 'u32[]', space=smem, size = 0x4, offset = 0x4, fixed_abs, tag = 'smem constant byte address 0x4 - core index']
  #allocation1 [shape = 'u32[144,128]{1,0:T(1,128)}', space=vmem, size = 0x12000, scoped, tag = 'internal scratch']
  %s0 = inlined_call_operand.vmem [shape: f32[128,32], index: 0, kind: input, shape index: {}]
  %s1 = inlined_call_operand.vmem [shape: f32[32,64], index: 1, kind: input, shape index: {}]
  %s2 = inlined_call_operand.vmem [shape: f32[1,32], index: 2, kind: input, shape index: {}]
  %s3 = inlined_call_operand.vmem [shape: f32[1,32], index: 3, kind: input, shape index: {}]
  %s4 = inlined_call_operand.vmem [shape: f32[256,32], index: 4, kind: output, shape index: {}]
  %s5 = sld [smem:[#allocation0]]
  $region49: #{tpu_custom_call.1} parent=0
    _
  %s7 = ssub.s32 1, %s5
  %s8 = scalar_select 0, %s7, %s5
  loop: start=0, step=1, limit=4
  $region2: #{tpu_custom_call.1} parent=0 // loop_pre_header
    _
  $region3: #{tpu_custom_call.1} parent=0 // loop_header
    %s10 = sphi 0, %s14
    %p11 = scmp.ge.s32.totalorder %s10, 4
    %s20 = sphi 0, %s22
    %s23 = sphi 0, %s20
    %s24 = sphi 0, %s23
    %s40 = sphi 0, %s24
    %s44 = sphi 0, %s44
    %s46 = sphi 0, %s44
    %s47 = sphi 0, %s46
    %s61 = sphi 0, %s47
    %s65 = sphi 0, %s65
    %s67 = sphi 0, %s65
    %s68 = sphi 0, %s67
    %s82 = sphi 0, %s68
    %s86 = sphi 0, %s86
    %s88 = sphi 0, %s86
    %s89 = sphi 0, %s88
    %s103 = sphi 0, %s89
    %s109 = sphi 0, %s111
    %s112 = sphi 0, %s109
    %s113 = sphi 0, %s112
    %s129 = sphi 0, %s113
  $region4: #{tpu_custom_call.1} parent=0 // loop_header_branch
    %13 = sbr.rel (%p11) target = $region8
  $region5: #{tpu_custom_call.1} parent=0 // loop_body
    %s15 = ssub.s32 %s10, 1
    %s16 = ssub.s32 %s10, 2
    %s17 = sadd.s32 %s10, 1
    %s18 = ssub.s32 %s10, %s17
    %p19 = scmp.eq.s32.totalorder %s18, 0
    %s21 = sadd.s32 %s20, 1
    %s22 = scalar_select %p19, %s20, %s21
    %p25 = pneg %p19
    %p26 = scmp.eq.s32.totalorder %s10, 1
    %p27 = por %p25, %p26
    %p28 = scmp.ne.s32.totalorder %s20, %s23
    %p29 = scmp.eq.s32.totalorder %s10, 0
    %p30 = por %p28, %p29
    %p31 = scmp.ne.s32.totalorder %s20, %s23
    %p32 = scmp.eq.s32.totalorder %s15, 1
    %p33 = por %p31, %p32
    %p34 = scmp.ne.s32.totalorder %s23, %s24
    %p35 = scmp.eq.s32.totalorder %s15, 0
    %p36 = por %p34, %p35
    %p37 = scmp.ne.s32.totalorder %s23, %s24
    %p38 = scmp.eq.s32.totalorder %s16, 1
    %p39 = por %p37, %p38
    %p41 = scmp.ne.s32.totalorder %s24, %s40
    %p42 = scmp.eq.s32.totalorder %s16, 0
    %p43 = por %p41, %p42
    %s45 = sadd.s32 %s44, 1
    %p48 = scmp.eq.s32.totalorder %s10, 1
    %p49 = scmp.ne.s32.totalorder %s44, %s46
    %p50 = scmp.eq.s32.totalorder %s10, 0
    %p51 = por %p49, %p50
    %p52 = scmp.ne.s32.totalorder %s44, %s46
    %p53 = scmp.eq.s32.totalorder %s15, 1
    %p54 = por %p52, %p53
    %p55 = scmp.ne.s32.totalorder %s46, %s47
    %p56 = scmp.eq.s32.totalorder %s15, 0
    %p57 = por %p55, %p56
    %p58 = scmp.ne.s32.totalorder %s46, %s47
    %p59 = scmp.eq.s32.totalorder %s16, 1
    %p60 = por %p58, %p59
    %p62 = scmp.ne.s32.totalorder %s47, %s61
    %p63 = scmp.eq.s32.totalorder %s16, 0
    %p64 = por %p62, %p63
    %s66 = sadd.s32 %s65, 1
    %p69 = scmp.eq.s32.totalorder %s10, 1
    %p70 = scmp.ne.s32.totalorder %s65, %s67
    %p71 = scmp.eq.s32.totalorder %s10, 0
    %p72 = por %p70, %p71
    %p73 = scmp.ne.s32.totalorder %s65, %s67
    %p74 = scmp.eq.s32.totalorder %s15, 1
    %p75 = por %p73, %p74
    %p76 = scmp.ne.s32.totalorder %s67, %s68
    %p77 = scmp.eq.s32.totalorder %s15, 0
    %p78 = por %p76, %p77
    %p79 = scmp.ne.s32.totalorder %s67, %s68
    %p80 = scmp.eq.s32.totalorder %s16, 1
    %p81 = por %p79, %p80
    %p83 = scmp.ne.s32.totalorder %s68, %s82
    %p84 = scmp.eq.s32.totalorder %s16, 0
    %p85 = por %p83, %p84
    %s87 = sadd.s32 %s86, 1
    %p90 = scmp.eq.s32.totalorder %s10, 1
    %p91 = scmp.ne.s32.totalorder %s86, %s88
    %p92 = scmp.eq.s32.totalorder %s10, 0
    %p93 = por %p91, %p92
    %p94 = scmp.ne.s32.totalorder %s86, %s88
    %p95 = scmp.eq.s32.totalorder %s15, 1
    %p96 = por %p94, %p95
    %p97 = scmp.ne.s32.totalorder %s88, %s89
    %p98 = scmp.eq.s32.totalorder %s15, 0
    %p99 = por %p97, %p98
    %p100 = scmp.ne.s32.totalorder %s88, %s89
    %p101 = scmp.eq.s32.totalorder %s16, 1
    %p102 = por %p100, %p101
    %p104 = scmp.ne.s32.totalorder %s89, %s103
    %p105 = scmp.eq.s32.totalorder %s16, 0
    %p106 = por %p104, %p105
    %s107 = ssub.s32 %s10, %s17
    %p108 = scmp.eq.s32.totalorder %s107, 0
    %s110 = sadd.s32 %s109, 1
    %s111 = scalar_select %p108, %s109, %s110
    %p114 = pneg %p108
    %p115 = scmp.eq.s32.totalorder %s10, 1
    %p116 = por %p114, %p115
    %p117 = scmp.ne.s32.totalorder %s109, %s112
    %p118 = scmp.eq.s32.totalorder %s10, 0
    %p119 = por %p117, %p118
    %p120 = scmp.ne.s32.totalorder %s109, %s112
    %p121 = scmp.eq.s32.totalorder %s15, 1
    %p122 = por %p120, %p121
    %p123 = scmp.ne.s32.totalorder %s112, %s113
    %p124 = scmp.eq.s32.totalorder %s15, 0
    %p125 = por %p123, %p124
    %p126 = scmp.ne.s32.totalorder %s112, %s113
    %p127 = scmp.eq.s32.totalorder %s16, 1
    %p128 = por %p126, %p127
    %p130 = scmp.ne.s32.totalorder %s113, %s129
    %p131 = scmp.eq.s32.totalorder %s16, 0
    %p132 = por %p130, %p131
    %p133 = scmp.le.s32.totalorder 1, %s10
    %p134 = scmp.lt.s32.totalorder %s10, 3
    %p135 = pnand %p133, %p134
    %p136 = pneg %p135
    // Predicated region
    $region9: #{tpu_custom_call.1} parent=5 // pred_check
      _
    $region10: #{tpu_custom_call.1} parent=5 // pred_check_branch
      %138 = sbr.rel (%p135) target = $region12
    $region11: #{tpu_custom_call.1} parent=5 // pred_region
      %s139 = ssub.s32 %s10, 1
      // Predicated region
      $region13: #{tpu_custom_call.1} parent=11 // pred_check
        %p140 = pneg %p57
      $region14: #{tpu_custom_call.1} parent=11 // pred_check_branch
        %142 = sbr.rel (%p140) target = $region16
      $region15: #{tpu_custom_call.1} parent=11 // pred_region
        _
      $region16: #{tpu_custom_call.1} parent=11 // pred_fallthru
        _
      // Predicated region
      $region17: #{tpu_custom_call.1} parent=11 // pred_check
        %p143 = pneg %p78
      $region18: #{tpu_custom_call.1} parent=11 // pred_check_branch
        %145 = sbr.rel (%p143) target = $region20
      $region19: #{tpu_custom_call.1} parent=11 // pred_region
        _
      $region20: #{tpu_custom_call.1} parent=11 // pred_fallthru
        _
      // Predicated region
      $region21: #{tpu_custom_call.1} parent=11 // pred_check
        %p146 = pneg %p99
      $region22: #{tpu_custom_call.1} parent=11 // pred_check_branch
        %148 = sbr.rel (%p146) target = $region24
      $region23: #{tpu_custom_call.1} parent=11 // pred_region
        _
      $region24: #{tpu_custom_call.1} parent=11 // pred_fallthru
        _
    $region12: #{tpu_custom_call.1} parent=5 // pred_fallthru
      _
    %p149 = scmp.lt.s32.totalorder %s10, 2
    // Predicated region
    $region25: #{tpu_custom_call.1} parent=5 // pred_check
      %p150 = pneg %p149
    $region26: #{tpu_custom_call.1} parent=5 // pred_check_branch
      %152 = sbr.rel (%p150) target = $region28
    $region27: #{tpu_custom_call.1} parent=5 // pred_region
      // Predicated region
      $region29: #{tpu_custom_call.1} parent=27 // pred_check
        %p153 = pneg %p30
      $region30: #{tpu_custom_call.1} parent=27 // pred_check_branch
        %155 = sbr.rel (%p153) target = $region32
      $region31: #{tpu_custom_call.1} parent=27 // pred_region
        %s156 = smul.u32 8, %s10
        %p157 = scmp.lt.s32.totalorder %s156, 15
        %s158 = scalar_select %p157, %s156, 15
        %s159 = smul.addr %s158, 8
        %s160 = scalar_lea.vmem %s0, %s159
        %s161 = smul.u32 8, %s10
      $region32: #{tpu_custom_call.1} parent=27 // pred_fallthru
        _
    $region28: #{tpu_custom_call.1} parent=5 // pred_fallthru
      _
    %p162 = scmp.le.s32.totalorder 1, %s10
    %p163 = scmp.lt.s32.totalorder %s10, 3
    %p164 = pnand %p162, %p163
    %p165 = pneg %p164
    // Predicated region
    $region33: #{tpu_custom_call.1} parent=5 // pred_check
      _
    $region34: #{tpu_custom_call.1} parent=5 // pred_check_branch
      %167 = sbr.rel (%p164) target = $region36
    $region35: #{tpu_custom_call.1} parent=5 // pred_region
      %s168 = ssub.s32 %s10, 1
      %s169 = smul.u32 8, %s15
      %p170 = scmp.lt.s32.totalorder %s169, 15
      %s171 = scalar_select %p170, %s169, 15
      %s172 = smul.addr %s171, 8
      %s173 = scalar_lea.vmem %s0, %s172
      %p174 = pneg %p36
      %p175 = pneg %p33
      %p176 = pneg %p57
      %p177 = pneg %p54
      %p178 = pneg %p78
      %p179 = pneg %p75
      %p180 = pneg %p99
      %p181 = pneg %p96
      %p182 = pneg %p125
      %p183 = pneg %p122
      %s184 = smul.u32 16, %s15
      %p185 = scmp.lt.s32.totalorder %s184, 31
      %s186 = scalar_select %p185, %s184, 31
      %s187 = smul.addr %s186, 8
      %s188 = scalar_lea.vmem %s4, %s187
      %s189 = smul.u32 8, %s15
      %p190 = scmp.lt.s32.totalorder %s189, 15
      %s191 = scalar_select %p190, %s189, 15
      %s192 = smul.addr %s191, 8
      %s193 = scalar_lea.vmem %s0, %s192
      %s194 = smul.u32 8, %s15
      %s195 = smul.u32 16, %s15
      %p196 = scmp.lt.s32.totalorder %s195, 31
      %s197 = scalar_select %p196, %s195, 31
      %s198 = smul.addr %s197, 8
      %s199 = scalar_lea.vmem %s4, %s198
      %s200 = smul.u32 16, %s15
      %v201 = vld [vmem:[%s193] sm:$0xff]
      %v202 = vld [vmem:[%s193 + $0x8] sm:$0xff]
      %v203 = vld [vmem:[%s193 + $0x10] sm:$0xff]
      %v204 = vld [vmem:[%s193 + $0x18] sm:$0xff]
      %v205 = vld [vmem:[%s193 + $0x20] sm:$0xff]
      %v206 = vld [vmem:[%s193 + $0x28] sm:$0xff]
      %v207 = vld [vmem:[%s193 + $0x30] sm:$0xff]
      %v208 = vld [vmem:[%s193 + $0x38] sm:$0xff]
      %v209 = vld [vmem:[%s1] sm:$0xff]
      %v210 = vld [vmem:[%s1 + $0x8] sm:$0xff]
      %v211 = vld [vmem:[%s1 + $0x10] sm:$0xff]
      %v212 = vld [vmem:[%s1 + $0x18] sm:$0xff]
      %vm213 = vcmask 261120
      %v215 = vsel %vm213, %v201, 0
      %v218 = vsel %vm213, %v202, 0
      %v221 = vsel %vm213, %v203, 0
      %v224 = vsel %vm213, %v204, 0
      %v227 = vsel %vm213, %v205, 0
      %v230 = vsel %vm213, %v206, 0
      %v233 = vsel %vm213, %v207, 0
      %v236 = vsel %vm213, %v208, 0
      %238 = vmatprep.subr.mxu0 0.0
      %239 = vmatpush1.msra.mxu0 %v209
      %240 = vmatprep.subr.mxu0 0.0
      %241 = vmatpush1.msra.mxu0 %v210
      %242 = vmatprep.subr.mxu0 0.0
      %243 = vmatpush1.msra.mxu0 %v211
      %244 = vmatprep.subr.mxu0 0.0
      %245 = vmatpush1.msra.mxu0 %v212
      %246 = vmatprep.subr.mxu0 0.0
      %247 = vmatpush1.msra.mxu0 0.0
      %248 = vmatprep.subr.mxu0 0.0
      %249 = vmatpush1.msra.mxu0 0.0
      %250 = vmatprep.subr.mxu0 0.0
      %251 = vmatpush1.msra.mxu0 0.0
      %252 = vmatprep.subr.mxu0 0.0
      %253 = vmatpush1.msra.mxu0 0.0
      %254 = vmatprep.subr.mxu0 0.0
      %255 = vmatpush1.msra.mxu0 0.0
      %256 = vmatprep.subr.mxu0 0.0
      %257 = vmatpush1.msra.mxu0 0.0
      %258 = vmatprep.subr.mxu0 0.0
      %259 = vmatpush1.msra.mxu0 0.0
      %260 = vmatprep.subr.mxu0 0.0
      %261 = vmatpush1.msra.mxu0 0.0
      %262 = vmatprep.subr.mxu0 0.0
      %263 = vmatpush1.msra.mxu0 0.0
      %264 = vmatprep.subr.mxu0 0.0
      %265 = vmatpush1.msra.mxu0 0.0
      %266 = vmatprep.subr.mxu0 0.0
      %267 = vmatpush1.msra.mxu0 0.0
      %268 = vmatprep.subr.mxu0 0.0
      %269 = vmatpush1.msra.mxu0 0.0
      %270 = vmatprep.subr.mxu0 0.0
      %271 = vmatpush1.msra.mxu0 0.0
      %272 = vmatprep.subr.mxu0 0.0
      %273 = vmatpush1.msra.mxu0 0.0
      %274 = vmatprep.subr.mxu0 0.0
      %275 = vmatpush1.msra.mxu0 0.0
      %276 = vmatprep.subr.mxu0 0.0
      %277 = vmatpush1.msra.mxu0 0.0
      %278 = vmatprep.subr.mxu0 0.0
      %279 = vmatpush1.msra.mxu0 0.0
      %280 = vmatprep.subr.mxu0 0.0
      %281 = vmatpush1.msra.mxu0 0.0
      %282 = vmatprep.subr.mxu0 0.0
      %283 = vmatpush1.msra.mxu0 0.0
      %284 = vmatprep.subr.mxu0 0.0
      %285 = vmatpush1.msra.mxu0 0.0
      %286 = vmatprep.subr.mxu0 0.0
      %287 = vmatpush1.msra.mxu0 0.0
      %288 = vmatprep.subr.mxu0 0.0
      %289 = vmatpush1.msra.mxu0 0.0
      %290 = vmatprep.subr.mxu0 0.0
      %291 = vmatpush1.msra.mxu0 0.0
      %292 = vmatprep.subr.mxu0 0.0
      %293 = vmatpush1.msra.mxu0 0.0
      %294 = vmatprep.subr.mxu0 0.0
      %295 = vmatpush1.msra.mxu0 0.0
      %296 = vmatprep.subr.mxu0 0.0
      %297 = vmatpush1.msra.mxu0 0.0
      %298 = vmatprep.subr.mxu0 0.0
      %299 = vmatpush1.msra.mxu0 0.0
      %300 = vmatprep.subr.mxu0 0.0
      %301 = vmatpush1.msra.mxu0 0.0
      %302 = vmatprep.mubr.f32.mxu0 0.0
      %303 = vmatmul.mubr.f32.gmra.mrb[0].mxu0 %v215
      %v304 = vpop.f32.mrb[0].mxu0
      %v305 = vadd.f32 0.0, %v304
      %v306 = vpop.f32.mrb[0].mxu0
      %307 = vmatprep.mubr.f32.mxu0 0.0
      %308 = vmatmul.mubr.f32.gmra.mrb[0].mxu0 %v218
      %v309 = vpop.f32.mrb[0].mxu0
      %v310 = vadd.f32 0.0, %v309
      %v311 = vpop.f32.mrb[0].mxu0
      %312 = vmatprep.mubr.f32.mxu0 0.0
      %313 = vmatmul.mubr.f32.gmra.mrb[0].mxu0 %v221
      %v314 = vpop.f32.mrb[0].mxu0
      %v315 = vadd.f32 0.0, %v314
      %v316 = vpop.f32.mrb[0].mxu0
      %317 = vmatprep.mubr.f32.mxu0 0.0
      %318 = vmatmul.mubr.f32.gmra.mrb[0].mxu0 %v224
      %v319 = vpop.f32.mrb[0].mxu0
      %v320 = vadd.f32 0.0, %v319
      %v321 = vpop.f32.mrb[0].mxu0
      %322 = vmatprep.mubr.f32.mxu0 0.0
      %323 = vmatmul.mubr.f32.gmra.mrb[0].mxu0 %v227
      %v324 = vpop.f32.mrb[0].mxu0
      %v325 = vadd.f32 0.0, %v324
      %v326 = vpop.f32.mrb[0].mxu0
      %327 = vmatprep.mubr.f32.mxu0 0.0
      %328 = vmatmul.mubr.f32.gmra.mrb[0].mxu0 %v230
      %v329 = vpop.f32.mrb[0].mxu0
      %v330 = vadd.f32 0.0, %v329
      %v331 = vpop.f32.mrb[0].mxu0
      %332 = vmatprep.mubr.f32.mxu0 0.0
      %333 = vmatmul.mubr.f32.gmra.mrb[0].mxu0 %v233
      %v334 = vpop.f32.mrb[0].mxu0
      %v335 = vadd.f32 0.0, %v334
      %v336 = vpop.f32.mrb[0].mxu0
      %337 = vmatprep.mubr.f32.mxu0 0.0
      %338 = vmatmul.mubr.f32.gmra.mrb[0].mxu0 %v236
      %v339 = vpop.f32.mrb[0].mxu0
      %v340 = vadd.f32 0.0, %v339
      %v341 = vpop.f32.mrb[0].mxu0
      %342 = vdwg.mxu0
      %v343 = vld [vmem:[%s2] sm:$0x1]
      %v344 = vld [vmem:[%s3] sm:$0x1]
      %vm345 = vcmask 130048
      %v346 = vsel %vm345, %v305, 0.0
      %347 = vadd.xlane.f32.xlu0 %v346
      %v348 = vpop.xlane.xlu0 %347
      %v349 = vsel %vm345, %v310, 0.0
      %350 = vadd.xlane.f32.xlu0 %v349
      %v351 = vpop.xlane.xlu0 %350
      %v352 = vsel %vm345, %v315, 0.0
      %353 = vadd.xlane.f32.xlu0 %v352
      %v354 = vpop.xlane.xlu0 %353
      %v355 = vsel %vm345, %v320, 0.0
      %356 = vadd.xlane.f32.xlu0 %v355
      %v357 = vpop.xlane.xlu0 %356
      %v358 = vsel %vm345, %v325, 0.0
      %359 = vadd.xlane.f32.xlu0 %v358
      %v360 = vpop.xlane.xlu0 %359
      %v361 = vsel %vm345, %v330, 0.0
      %362 = vadd.xlane.f32.xlu0 %v361
      %v363 = vpop.xlane.xlu0 %362
      %v364 = vsel %vm345, %v335, 0.0
      %365 = vadd.xlane.f32.xlu0 %v364
      %v366 = vpop.xlane.xlu0 %365
      %v367 = vsel %vm345, %v340, 0.0
      %368 = vadd.xlane.f32.xlu0 %v367
      %v369 = vpop.xlane.xlu0 %368
      %v370 = vrcp.pop 16.0
      %v371 = vmul.f32 %v348, %v370
      %v372 = vmul.f32 %v351, %v370
      %v373 = vmul.f32 %v354, %v370
      %v374 = vmul.f32 %v357, %v370
      %v375 = vmul.f32 %v360, %v370
      %v376 = vmul.f32 %v363, %v370
      %v377 = vmul.f32 %v366, %v370
      %v378 = vmul.f32 %v369, %v370
      %v379 = vmul.f32 %v305, %v305
      %v380 = vmul.f32 %v310, %v310
      %v381 = vmul.f32 %v315, %v315
      %v382 = vmul.f32 %v320, %v320
      %v383 = vmul.f32 %v325, %v325
      %v384 = vmul.f32 %v330, %v330
      %v385 = vmul.f32 %v335, %v335
      %v386 = vmul.f32 %v340, %v340
      %v387 = vsel %vm345, %v379, 0.0
      %388 = vadd.xlane.f32.xlu0 %v387
      %v389 = vpop.xlane.xlu0 %388
      %v390 = vsel %vm345, %v380, 0.0
      %391 = vadd.xlane.f32.xlu0 %v390
      %v392 = vpop.xlane.xlu0 %391
      %v393 = vsel %vm345, %v381, 0.0
      %394 = vadd.xlane.f32.xlu0 %v393
      %v395 = vpop.xlane.xlu0 %394
      %v396 = vsel %vm345, %v382, 0.0
      %397 = vadd.xlane.f32.xlu0 %v396
      %v398 = vpop.xlane.xlu0 %397
      %v399 = vsel %vm345, %v383, 0.0
      %400 = vadd.xlane.f32.xlu0 %v399
      %v401 = vpop.xlane.xlu0 %400
      %v402 = vsel %vm345, %v384, 0.0
      %403 = vadd.xlane.f32.xlu0 %v402
      %v404 = vpop.xlane.xlu0 %403
      %v405 = vsel %vm345, %v385, 0.0
      %406 = vadd.xlane.f32.xlu0 %v405
      %v407 = vpop.xlane.xlu0 %406
      %v408 = vsel %vm345, %v386, 0.0
      %409 = vadd.xlane.f32.xlu0 %v408
      %v410 = vpop.xlane.xlu0 %409
      %v411 = vmul.f32 %v389, %v370
      %v412 = vmul.f32 %v392, %v370
      %v413 = vmul.f32 %v395, %v370
      %v414 = vmul.f32 %v398, %v370
      %v415 = vmul.f32 %v401, %v370
      %v416 = vmul.f32 %v404, %v370
      %v417 = vmul.f32 %v407, %v370
      %v418 = vmul.f32 %v410, %v370
      %v419 = vmul.f32 %v371, %v371
      %v420 = vmul.f32 %v372, %v372
      %v421 = vmul.f32 %v373, %v373
      %v422 = vmul.f32 %v374, %v374
      %v423 = vmul.f32 %v375, %v375
      %v424 = vmul.f32 %v376, %v376
      %v425 = vmul.f32 %v377, %v377
      %v426 = vmul.f32 %v378, %v378
      %v427 = vsub.f32 %v411, %v419
      %v428 = vsub.f32 %v412, %v420
      %v429 = vsub.f32 %v413, %v421
      %v430 = vsub.f32 %v414, %v422
      %v431 = vsub.f32 %v415, %v423
      %v432 = vsub.f32 %v416, %v424
      %v433 = vsub.f32 %v417, %v425
      %v434 = vsub.f32 %v418, %v426
      %v435 = vmax.f32 %v427, 0.0
      %v436 = vmax.f32 %v428, 0.0
      %v437 = vmax.f32 %v429, 0.0
      %v438 = vmax.f32 %v430, 0.0
      %v439 = vmax.f32 %v431, 0.0
      %v440 = vmax.f32 %v432, 0.0
      %v441 = vmax.f32 %v433, 0.0
      %v442 = vmax.f32 %v434, 0.0
      %v443 = vsub.f32 %v305, %v371
      %v444 = vsub.f32 %v310, %v372
      %v445 = vsub.f32 %v315, %v373
      %v446 = vsub.f32 %v320, %v374
      %v447 = vsub.f32 %v325, %v375
      %v448 = vsub.f32 %v330, %v376
      %v449 = vsub.f32 %v335, %v377
      %v450 = vsub.f32 %v340, %v378
      %v451 = vadd.f32 %v435, 1e-05
      %v452 = vadd.f32 %v436, 1e-05
      %v453 = vadd.f32 %v437, 1e-05
      %v454 = vadd.f32 %v438, 1e-05
      %v455 = vadd.f32 %v439, 1e-05
      %v456 = vadd.f32 %v440, 1e-05
      %v457 = vadd.f32 %v441, 1e-05
      %v458 = vadd.f32 %v442, 1e-05
      %v459 = vrsqrt.pop %v451
      %v460 = vrsqrt.pop %v452
      %v461 = vrsqrt.pop %v453
      %v462 = vrsqrt.pop %v454
      %v463 = vrsqrt.pop %v455
      %v464 = vrsqrt.pop %v456
      %v465 = vrsqrt.pop %v457
      %v466 = vrsqrt.pop %v458
      %v467 = vmul.f32 %v443, %v459
      %v468 = vmul.f32 %v444, %v460
      %v469 = vmul.f32 %v445, %v461
      %v470 = vmul.f32 %v446, %v462
      %v471 = vmul.f32 %v447, %v463
      %v472 = vmul.f32 %v448, %v464
      %v473 = vmul.f32 %v449, %v465
      %v474 = vmul.f32 %v450, %v466
      %483 = vrot.lane.b32.xlu0 %v305, 112
      %v484 = vpop.permute.xlu0 %483
      %485 = vrot.lane.b32.xlu0 %v310, 112
      %v486 = vpop.permute.xlu0 %485
      %487 = vrot.lane.b32.xlu0 %v315, 112
      %v488 = vpop.permute.xlu0 %487
      %489 = vrot.lane.b32.xlu0 %v320, 112
      %v490 = vpop.permute.xlu0 %489
      %491 = vrot.lane.b32.xlu0 %v325, 112
      %v492 = vpop.permute.xlu0 %491
      %493 = vrot.lane.b32.xlu0 %v330, 112
      %v494 = vpop.permute.xlu0 %493
      %495 = vrot.lane.b32.xlu0 %v335, 112
      %v496 = vpop.permute.xlu0 %495
      %497 = vrot.lane.b32.xlu0 %v340, 112
      %v498 = vpop.permute.xlu0 %497
      %v507 = vsel %vm345, %v484, 0.0
      %508 = vadd.xlane.f32.xlu0 %v507
      %v509 = vpop.xlane.xlu0 %508
      %v510 = vsel %vm345, %v486, 0.0
      %511 = vadd.xlane.f32.xlu0 %v510
      %v512 = vpop.xlane.xlu0 %511
      %v513 = vsel %vm345, %v488, 0.0
      %514 = vadd.xlane.f32.xlu0 %v513
      %v515 = vpop.xlane.xlu0 %514
      %v516 = vsel %vm345, %v490, 0.0
      %517 = vadd.xlane.f32.xlu0 %v516
      %v518 = vpop.xlane.xlu0 %517
      %v519 = vsel %vm345, %v492, 0.0
      %520 = vadd.xlane.f32.xlu0 %v519
      %v521 = vpop.xlane.xlu0 %520
      %v522 = vsel %vm345, %v494, 0.0
      %523 = vadd.xlane.f32.xlu0 %v522
      %v524 = vpop.xlane.xlu0 %523
      %v525 = vsel %vm345, %v496, 0.0
      %526 = vadd.xlane.f32.xlu0 %v525
      %v527 = vpop.xlane.xlu0 %526
      %v528 = vsel %vm345, %v498, 0.0
      %529 = vadd.xlane.f32.xlu0 %v528
      %v530 = vpop.xlane.xlu0 %529
      %v531 = vmul.f32 %v509, %v370
      %v532 = vmul.f32 %v512, %v370
      %v533 = vmul.f32 %v515, %v370
      %v534 = vmul.f32 %v518, %v370
      %v535 = vmul.f32 %v521, %v370
      %v536 = vmul.f32 %v524, %v370
      %v537 = vmul.f32 %v527, %v370
      %v538 = vmul.f32 %v530, %v370
      %547 = vrot.lane.b32.xlu0 %v379, 112
      %v548 = vpop.permute.xlu0 %547
      %549 = vrot.lane.b32.xlu0 %v380, 112
      %v550 = vpop.permute.xlu0 %549
      %551 = vrot.lane.b32.xlu0 %v381, 112
      %v552 = vpop.permute.xlu0 %551
      %553 = vrot.lane.b32.xlu0 %v382, 112
      %v554 = vpop.permute.xlu0 %553
      %555 = vrot.lane.b32.xlu0 %v383, 112
      %v556 = vpop.permute.xlu0 %555
      %557 = vrot.lane.b32.xlu0 %v384, 112
      %v558 = vpop.permute.xlu0 %557
      %559 = vrot.lane.b32.xlu0 %v385, 112
      %v560 = vpop.permute.xlu0 %559
      %561 = vrot.lane.b32.xlu0 %v386, 112
      %v562 = vpop.permute.xlu0 %561
      %v571 = vsel %vm345, %v548, 0.0
      %572 = vadd.xlane.f32.xlu0 %v571
      %v573 = vpop.xlane.xlu0 %572
      %v574 = vsel %vm345, %v550, 0.0
      %575 = vadd.xlane.f32.xlu0 %v574
      %v576 = vpop.xlane.xlu0 %575
      %v577 = vsel %vm345, %v552, 0.0
      %578 = vadd.xlane.f32.xlu0 %v577
      %v579 = vpop.xlane.xlu0 %578
      %v580 = vsel %vm345, %v554, 0.0
      %581 = vadd.xlane.f32.xlu0 %v580
      %v582 = vpop.xlane.xlu0 %581
      %v583 = vsel %vm345, %v556, 0.0
      %584 = vadd.xlane.f32.xlu0 %v583
      %v585 = vpop.xlane.xlu0 %584
      %v586 = vsel %vm345, %v558, 0.0
      %587 = vadd.xlane.f32.xlu0 %v586
      %v588 = vpop.xlane.xlu0 %587
      %v589 = vsel %vm345, %v560, 0.0
      %590 = vadd.xlane.f32.xlu0 %v589
      %v591 = vpop.xlane.xlu0 %590
      %v592 = vsel %vm345, %v562, 0.0
      %593 = vadd.xlane.f32.xlu0 %v592
      %v594 = vpop.xlane.xlu0 %593
      %v595 = vmul.f32 %v573, %v370
      %v596 = vmul.f32 %v576, %v370
      %v597 = vmul.f32 %v579, %v370
      %v598 = vmul.f32 %v582, %v370
      %v599 = vmul.f32 %v585, %v370
      %v600 = vmul.f32 %v588, %v370
      %v601 = vmul.f32 %v591, %v370
      %v602 = vmul.f32 %v594, %v370
      %v603 = vmul.f32 %v531, %v531
      %v604 = vmul.f32 %v532, %v532
      %v605 = vmul.f32 %v533, %v533
      %v606 = vmul.f32 %v534, %v534
      %v607 = vmul.f32 %v535, %v535
      %v608 = vmul.f32 %v536, %v536
      %v609 = vmul.f32 %v537, %v537
      %v610 = vmul.f32 %v538, %v538
      %v611 = vsub.f32 %v595, %v603
      %v612 = vsub.f32 %v596, %v604
      %v613 = vsub.f32 %v597, %v605
      %v614 = vsub.f32 %v598, %v606
      %v615 = vsub.f32 %v599, %v607
      %v616 = vsub.f32 %v600, %v608
      %v617 = vsub.f32 %v601, %v609
      %v618 = vsub.f32 %v602, %v610
      %v619 = vmax.f32 %v611, 0.0
      %v620 = vmax.f32 %v612, 0.0
      %v621 = vmax.f32 %v613, 0.0
      %v622 = vmax.f32 %v614, 0.0
      %v623 = vmax.f32 %v615, 0.0
      %v624 = vmax.f32 %v616, 0.0
      %v625 = vmax.f32 %v617, 0.0
      %v626 = vmax.f32 %v618, 0.0
      %v627 = vsub.f32 %v305, %v531
      %v628 = vsub.f32 %v310, %v532
      %v629 = vsub.f32 %v315, %v533
      %v630 = vsub.f32 %v320, %v534
      %v631 = vsub.f32 %v325, %v535
      %v632 = vsub.f32 %v330, %v536
      %v633 = vsub.f32 %v335, %v537
      %v634 = vsub.f32 %v340, %v538
      %v635 = vadd.f32 %v619, 1e-05
      %v636 = vadd.f32 %v620, 1e-05
      %v637 = vadd.f32 %v621, 1e-05
      %v638 = vadd.f32 %v622, 1e-05
      %v639 = vadd.f32 %v623, 1e-05
      %v640 = vadd.f32 %v624, 1e-05
      %v641 = vadd.f32 %v625, 1e-05
      %v642 = vadd.f32 %v626, 1e-05
      %v643 = vrsqrt.pop %v635
      %v644 = vrsqrt.pop %v636
      %v645 = vrsqrt.pop %v637
      %v646 = vrsqrt.pop %v638
      %v647 = vrsqrt.pop %v639
      %v648 = vrsqrt.pop %v640
      %v649 = vrsqrt.pop %v641
      %v650 = vrsqrt.pop %v642
      %v651 = vmul.f32 %v627, %v643
      %v652 = vmul.f32 %v628, %v644
      %v653 = vmul.f32 %v629, %v645
      %v654 = vmul.f32 %v630, %v646
      %v655 = vmul.f32 %v631, %v647
      %v656 = vmul.f32 %v632, %v648
      %v657 = vmul.f32 %v633, %v649
      %v658 = vmul.f32 %v634, %v650
      %v659 = vsel %vm345, %v467, %v651
      %v660 = vsel %vm345, %v468, %v652
      %v661 = vsel %vm345, %v469, %v653
      %v662 = vsel %vm345, %v470, %v654
      %v663 = vsel %vm345, %v471, %v655
      %v664 = vsel %vm345, %v472, %v656
      %v665 = vsel %vm345, %v473, %v657
      %v666 = vsel %vm345, %v474, %v658
      %v668 = vlaneseq
      %v669 = vshrl.u32 %v668, 7
      %v670 = vsub.s32 0, %v669
      %v671 = vrot.slane %v343, %v670
      %v673 = vmul.f32 %v659, %v671
      %v674 = vmul.f32 %v660, %v671
      %v675 = vmul.f32 %v661, %v671
      %v676 = vmul.f32 %v662, %v671
      %v677 = vmul.f32 %v663, %v671
      %v678 = vmul.f32 %v664, %v671
      %v679 = vmul.f32 %v665, %v671
      %v680 = vmul.f32 %v666, %v671
      %v682 = vlaneseq
      %v683 = vshrl.u32 %v682, 7
      %v684 = vsub.s32 0, %v683
      %v685 = vrot.slane %v344, %v684
      %v687 = vadd.f32 %v673, %v685
      %v688 = vadd.f32 %v674, %v685
      %v689 = vadd.f32 %v675, %v685
      %v690 = vadd.f32 %v676, %v685
      %v691 = vadd.f32 %v677, %v685
      %v692 = vadd.f32 %v678, %v685
      %v693 = vadd.f32 %v679, %v685
      %v694 = vadd.f32 %v680, %v685
      %695 = vrot.lane.b32.xlu0 %v305, 96
      %v696 = vpop.permute.xlu0 %695
      %697 = vrot.lane.b32.xlu0 %v310, 96
      %v698 = vpop.permute.xlu0 %697
      %699 = vrot.lane.b32.xlu0 %v315, 96
      %v700 = vpop.permute.xlu0 %699
      %701 = vrot.lane.b32.xlu0 %v320, 96
      %v702 = vpop.permute.xlu0 %701
      %703 = vrot.lane.b32.xlu0 %v325, 96
      %v704 = vpop.permute.xlu0 %703
      %705 = vrot.lane.b32.xlu0 %v330, 96
      %v706 = vpop.permute.xlu0 %705
      %707 = vrot.lane.b32.xlu0 %v335, 96
      %v708 = vpop.permute.xlu0 %707
      %709 = vrot.lane.b32.xlu0 %v340, 96
      %v710 = vpop.permute.xlu0 %709
      %v719 = vsel %vm345, %v696, 0.0
      %720 = vadd.xlane.f32.xlu0 %v719
      %v721 = vpop.xlane.xlu0 %720
      %v722 = vsel %vm345, %v698, 0.0
      %723 = vadd.xlane.f32.xlu0 %v722
      %v724 = vpop.xlane.xlu0 %723
      %v725 = vsel %vm345, %v700, 0.0
      %726 = vadd.xlane.f32.xlu0 %v725
      %v727 = vpop.xlane.xlu0 %726
      %v728 = vsel %vm345, %v702, 0.0
      %729 = vadd.xlane.f32.xlu0 %v728
      %v730 = vpop.xlane.xlu0 %729
      %v731 = vsel %vm345, %v704, 0.0
      %732 = vadd.xlane.f32.xlu0 %v731
      %v733 = vpop.xlane.xlu0 %732
      %v734 = vsel %vm345, %v706, 0.0
      %735 = vadd.xlane.f32.xlu0 %v734
      %v736 = vpop.xlane.xlu0 %735
      %v737 = vsel %vm345, %v708, 0.0
      %738 = vadd.xlane.f32.xlu0 %v737
      %v739 = vpop.xlane.xlu0 %738
      %v740 = vsel %vm345, %v710, 0.0
      %741 = vadd.xlane.f32.xlu0 %v740
      %v742 = vpop.xlane.xlu0 %741
      %v743 = vmul.f32 %v721, %v370
      %v744 = vmul.f32 %v724, %v370
      %v745 = vmul.f32 %v727, %v370
      %v746 = vmul.f32 %v730, %v370
      %v747 = vmul.f32 %v733, %v370
      %v748 = vmul.f32 %v736, %v370
      %v749 = vmul.f32 %v739, %v370
      %v750 = vmul.f32 %v742, %v370
      %751 = vrot.lane.b32.xlu0 %v379, 96
      %v752 = vpop.permute.xlu0 %751
      %753 = vrot.lane.b32.xlu0 %v380, 96
      %v754 = vpop.permute.xlu0 %753
      %755 = vrot.lane.b32.xlu0 %v381, 96
      %v756 = vpop.permute.xlu0 %755
      %757 = vrot.lane.b32.xlu0 %v382, 96
      %v758 = vpop.permute.xlu0 %757
      %759 = vrot.lane.b32.xlu0 %v383, 96
      %v760 = vpop.permute.xlu0 %759
      %761 = vrot.lane.b32.xlu0 %v384, 96
      %v762 = vpop.permute.xlu0 %761
      %763 = vrot.lane.b32.xlu0 %v385, 96
      %v764 = vpop.permute.xlu0 %763
      %765 = vrot.lane.b32.xlu0 %v386, 96
      %v766 = vpop.permute.xlu0 %765
      %v775 = vsel %vm345, %v752, 0.0
      %776 = vadd.xlane.f32.xlu0 %v775
      %v777 = vpop.xlane.xlu0 %776
      %v778 = vsel %vm345, %v754, 0.0
      %779 = vadd.xlane.f32.xlu0 %v778
      %v780 = vpop.xlane.xlu0 %779
      %v781 = vsel %vm345, %v756, 0.0
      %782 = vadd.xlane.f32.xlu0 %v781
      %v783 = vpop.xlane.xlu0 %782
      %v784 = vsel %vm345, %v758, 0.0
      %785 = vadd.xlane.f32.xlu0 %v784
      %v786 = vpop.xlane.xlu0 %785
      %v787 = vsel %vm345, %v760, 0.0
      %788 = vadd.xlane.f32.xlu0 %v787
      %v789 = vpop.xlane.xlu0 %788
      %v790 = vsel %vm345, %v762, 0.0
      %791 = vadd.xlane.f32.xlu0 %v790
      %v792 = vpop.xlane.xlu0 %791
      %v793 = vsel %vm345, %v764, 0.0
      %794 = vadd.xlane.f32.xlu0 %v793
      %v795 = vpop.xlane.xlu0 %794
      %v796 = vsel %vm345, %v766, 0.0
      %797 = vadd.xlane.f32.xlu0 %v796
      %v798 = vpop.xlane.xlu0 %797
      %v799 = vmul.f32 %v777, %v370
      %v800 = vmul.f32 %v780, %v370
      %v801 = vmul.f32 %v783, %v370
      %v802 = vmul.f32 %v786, %v370
      %v803 = vmul.f32 %v789, %v370
      %v804 = vmul.f32 %v792, %v370
      %v805 = vmul.f32 %v795, %v370
      %v806 = vmul.f32 %v798, %v370
      %v807 = vmul.f32 %v743, %v743
      %v808 = vmul.f32 %v744, %v744
      %v809 = vmul.f32 %v745, %v745
      %v810 = vmul.f32 %v746, %v746
      %v811 = vmul.f32 %v747, %v747
      %v812 = vmul.f32 %v748, %v748
      %v813 = vmul.f32 %v749, %v749
      %v814 = vmul.f32 %v750, %v750
      %v815 = vsub.f32 %v799, %v807
      %v816 = vsub.f32 %v800, %v808
      %v817 = vsub.f32 %v801, %v809
      %v818 = vsub.f32 %v802, %v810
      %v819 = vsub.f32 %v803, %v811
      %v820 = vsub.f32 %v804, %v812
      %v821 = vsub.f32 %v805, %v813
      %v822 = vsub.f32 %v806, %v814
      %v823 = vmax.f32 %v815, 0.0
      %v824 = vmax.f32 %v816, 0.0
      %v825 = vmax.f32 %v817, 0.0
      %v826 = vmax.f32 %v818, 0.0
      %v827 = vmax.f32 %v819, 0.0
      %v828 = vmax.f32 %v820, 0.0
      %v829 = vmax.f32 %v821, 0.0
      %v830 = vmax.f32 %v822, 0.0
      %v831 = vsub.f32 %v305, %v743
      %v832 = vsub.f32 %v310, %v744
      %v833 = vsub.f32 %v315, %v745
      %v834 = vsub.f32 %v320, %v746
      %v835 = vsub.f32 %v325, %v747
      %v836 = vsub.f32 %v330, %v748
      %v837 = vsub.f32 %v335, %v749
      %v838 = vsub.f32 %v340, %v750
      %v839 = vadd.f32 %v823, 1e-05
      %v840 = vadd.f32 %v824, 1e-05
      %v841 = vadd.f32 %v825, 1e-05
      %v842 = vadd.f32 %v826, 1e-05
      %v843 = vadd.f32 %v827, 1e-05
      %v844 = vadd.f32 %v828, 1e-05
      %v845 = vadd.f32 %v829, 1e-05
      %v846 = vadd.f32 %v830, 1e-05
      %v847 = vrsqrt.pop %v839
      %v848 = vrsqrt.pop %v840
      %v849 = vrsqrt.pop %v841
      %v850 = vrsqrt.pop %v842
      %v851 = vrsqrt.pop %v843
      %v852 = vrsqrt.pop %v844
      %v853 = vrsqrt.pop %v845
      %v854 = vrsqrt.pop %v846
      %v855 = vmul.f32 %v831, %v847
      %v856 = vmul.f32 %v832, %v848
      %v857 = vmul.f32 %v833, %v849
      %v858 = vmul.f32 %v834, %v850
      %v859 = vmul.f32 %v835, %v851
      %v860 = vmul.f32 %v836, %v852
      %v861 = vmul.f32 %v837, %v853
      %v862 = vmul.f32 %v838, %v854
      %863 = vrot.lane.b32.xlu0 %v305, 80
      %v864 = vpop.permute.xlu0 %863
      %865 = vrot.lane.b32.xlu0 %v310, 80
      %v866 = vpop.permute.xlu0 %865
      %867 = vrot.lane.b32.xlu0 %v315, 80
      %v868 = vpop.permute.xlu0 %867
      %869 = vrot.lane.b32.xlu0 %v320, 80
      %v870 = vpop.permute.xlu0 %869
      %871 = vrot.lane.b32.xlu0 %v325, 80
      %v872 = vpop.permute.xlu0 %871
      %873 = vrot.lane.b32.xlu0 %v330, 80
      %v874 = vpop.permute.xlu0 %873
      %875 = vrot.lane.b32.xlu0 %v335, 80
      %v876 = vpop.permute.xlu0 %875
      %877 = vrot.lane.b32.xlu0 %v340, 80
      %v878 = vpop.permute.xlu0 %877
      %v887 = vsel %vm345, %v864, 0.0
      %888 = vadd.xlane.f32.xlu0 %v887
      %v889 = vpop.xlane.xlu0 %888
      %v890 = vsel %vm345, %v866, 0.0
      %891 = vadd.xlane.f32.xlu0 %v890
      %v892 = vpop.xlane.xlu0 %891
      %v893 = vsel %vm345, %v868, 0.0
      %894 = vadd.xlane.f32.xlu0 %v893
      %v895 = vpop.xlane.xlu0 %894
      %v896 = vsel %vm345, %v870, 0.0
      %897 = vadd.xlane.f32.xlu0 %v896
      %v898 = vpop.xlane.xlu0 %897
      %v899 = vsel %vm345, %v872, 0.0
      %900 = vadd.xlane.f32.xlu0 %v899
      %v901 = vpop.xlane.xlu0 %900
      %v902 = vsel %vm345, %v874, 0.0
      %903 = vadd.xlane.f32.xlu0 %v902
      %v904 = vpop.xlane.xlu0 %903
      %v905 = vsel %vm345, %v876, 0.0
      %906 = vadd.xlane.f32.xlu0 %v905
      %v907 = vpop.xlane.xlu0 %906
      %v908 = vsel %vm345, %v878, 0.0
      %909 = vadd.xlane.f32.xlu0 %v908
      %v910 = vpop.xlane.xlu0 %909
      %v911 = vmul.f32 %v889, %v370
      %v912 = vmul.f32 %v892, %v370
      %v913 = vmul.f32 %v895, %v370
      %v914 = vmul.f32 %v898, %v370
      %v915 = vmul.f32 %v901, %v370
      %v916 = vmul.f32 %v904, %v370
      %v917 = vmul.f32 %v907, %v370
      %v918 = vmul.f32 %v910, %v370
      %919 = vrot.lane.b32.xlu0 %v379, 80
      %v920 = vpop.permute.xlu0 %919
      %921 = vrot.lane.b32.xlu0 %v380, 80
      %v922 = vpop.permute.xlu0 %921
      %923 = vrot.lane.b32.xlu0 %v381, 80
      %v924 = vpop.permute.xlu0 %923
      %925 = vrot.lane.b32.xlu0 %v382, 80
      %v926 = vpop.permute.xlu0 %925
      %927 = vrot.lane.b32.xlu0 %v383, 80
      %v928 = vpop.permute.xlu0 %927
      %929 = vrot.lane.b32.xlu0 %v384, 80
      %v930 = vpop.permute.xlu0 %929
      %931 = vrot.lane.b32.xlu0 %v385, 80
      %v932 = vpop.permute.xlu0 %931
      %933 = vrot.lane.b32.xlu0 %v386, 80
      %v934 = vpop.permute.xlu0 %933
      %v943 = vsel %vm345, %v920, 0.0
      %944 = vadd.xlane.f32.xlu0 %v943
      %v945 = vpop.xlane.xlu0 %944
      %v946 = vsel %vm345, %v922, 0.0
      %947 = vadd.xlane.f32.xlu0 %v946
      %v948 = vpop.xlane.xlu0 %947
      %v949 = vsel %vm345, %v924, 0.0
      %950 = vadd.xlane.f32.xlu0 %v949
      %v951 = vpop.xlane.xlu0 %950
      %v952 = vsel %vm345, %v926, 0.0
      %953 = vadd.xlane.f32.xlu0 %v952
      %v954 = vpop.xlane.xlu0 %953
      %v955 = vsel %vm345, %v928, 0.0
      %956 = vadd.xlane.f32.xlu0 %v955
      %v957 = vpop.xlane.xlu0 %956
      %v958 = vsel %vm345, %v930, 0.0
      %959 = vadd.xlane.f32.xlu0 %v958
      %v960 = vpop.xlane.xlu0 %959
      %v961 = vsel %vm345, %v932, 0.0
      %962 = vadd.xlane.f32.xlu0 %v961
      %v963 = vpop.xlane.xlu0 %962
      %v964 = vsel %vm345, %v934, 0.0
      %965 = vadd.xlane.f32.xlu0 %v964
      %v966 = vpop.xlane.xlu0 %965
      %v967 = vmul.f32 %v945, %v370
      %v968 = vmul.f32 %v948, %v370
      %v969 = vmul.f32 %v951, %v370
      %v970 = vmul.f32 %v954, %v370
      %v971 = vmul.f32 %v957, %v370
      %v972 = vmul.f32 %v960, %v370
      %v973 = vmul.f32 %v963, %v370
      %v974 = vmul.f32 %v966, %v370
      %v975 = vmul.f32 %v911, %v911
      %v976 = vmul.f32 %v912, %v912
      %v977 = vmul.f32 %v913, %v913
      %v978 = vmul.f32 %v914, %v914
      %v979 = vmul.f32 %v915, %v915
      %v980 = vmul.f32 %v916, %v916
      %v981 = vmul.f32 %v917, %v917
      %v982 = vmul.f32 %v918, %v918
      %v983 = vsub.f32 %v967, %v975
      %v984 = vsub.f32 %v968, %v976
      %v985 = vsub.f32 %v969, %v977
      %v986 = vsub.f32 %v970, %v978
      %v987 = vsub.f32 %v971, %v979
      %v988 = vsub.f32 %v972, %v980
      %v989 = vsub.f32 %v973, %v981
      %v990 = vsub.f32 %v974, %v982
      %v991 = vmax.f32 %v983, 0.0
      %v992 = vmax.f32 %v984, 0.0
      %v993 = vmax.f32 %v985, 0.0
      %v994 = vmax.f32 %v986, 0.0
      %v995 = vmax.f32 %v987, 0.0
      %v996 = vmax.f32 %v988, 0.0
      %v997 = vmax.f32 %v989, 0.0
      %v998 = vmax.f32 %v990, 0.0
      %v999 = vsub.f32 %v305, %v911
      %v1000 = vsub.f32 %v310, %v912
      %v1001 = vsub.f32 %v315, %v913
      %v1002 = vsub.f32 %v320, %v914
      %v1003 = vsub.f32 %v325, %v915
      %v1004 = vsub.f32 %v330, %v916
      %v1005 = vsub.f32 %v335, %v917
      %v1006 = vsub.f32 %v340, %v918
      %v1007 = vadd.f32 %v991, 1e-05
      %v1008 = vadd.f32 %v992, 1e-05
      %v1009 = vadd.f32 %v993, 1e-05
      %v1010 = vadd.f32 %v994, 1e-05
      %v1011 = vadd.f32 %v995, 1e-05
      %v1012 = vadd.f32 %v996, 1e-05
      %v1013 = vadd.f32 %v997, 1e-05
      %v1014 = vadd.f32 %v998, 1e-05
      %v1015 = vrsqrt.pop %v1007
      %v1016 = vrsqrt.pop %v1008
      %v1017 = vrsqrt.pop %v1009
      %v1018 = vrsqrt.pop %v1010
      %v1019 = vrsqrt.pop %v1011
      %v1020 = vrsqrt.pop %v1012
      %v1021 = vrsqrt.pop %v1013
      %v1022 = vrsqrt.pop %v1014
      %v1023 = vmul.f32 %v999, %v1015
      %v1024 = vmul.f32 %v1000, %v1016
      %v1025 = vmul.f32 %v1001, %v1017
      %v1026 = vmul.f32 %v1002, %v1018
      %v1027 = vmul.f32 %v1003, %v1019
      %v1028 = vmul.f32 %v1004, %v1020
      %v1029 = vmul.f32 %v1005, %v1021
      %v1030 = vmul.f32 %v1006, %v1022
      %1039 = vrot.lane.b32.xlu0 %v855, 96
      %v1040 = vpop.permute.xlu0 %1039
      %1041 = vrot.lane.b32.xlu0 %v856, 96
      %v1042 = vpop.permute.xlu0 %1041
      %1043 = vrot.lane.b32.xlu0 %v857, 96
      %v1044 = vpop.permute.xlu0 %1043
      %1045 = vrot.lane.b32.xlu0 %v858, 96
      %v1046 = vpop.permute.xlu0 %1045
      %1047 = vrot.lane.b32.xlu0 %v859, 96
      %v1048 = vpop.permute.xlu0 %1047
      %1049 = vrot.lane.b32.xlu0 %v860, 96
      %v1050 = vpop.permute.xlu0 %1049
      %1051 = vrot.lane.b32.xlu0 %v861, 96
      %v1052 = vpop.permute.xlu0 %1051
      %1053 = vrot.lane.b32.xlu0 %v862, 96
      %v1054 = vpop.permute.xlu0 %1053
      %1071 = vrot.lane.b32.xlu0 %v1023, 96
      %v1072 = vpop.permute.xlu0 %1071
      %1073 = vrot.lane.b32.xlu0 %v1024, 96
      %v1074 = vpop.permute.xlu0 %1073
      %1075 = vrot.lane.b32.xlu0 %v1025, 96
      %v1076 = vpop.permute.xlu0 %1075
      %1077 = vrot.lane.b32.xlu0 %v1026, 96
      %v1078 = vpop.permute.xlu0 %1077
      %1079 = vrot.lane.b32.xlu0 %v1027, 96
      %v1080 = vpop.permute.xlu0 %1079
      %1081 = vrot.lane.b32.xlu0 %v1028, 96
      %v1082 = vpop.permute.xlu0 %1081
      %1083 = vrot.lane.b32.xlu0 %v1029, 96
      %v1084 = vpop.permute.xlu0 %1083
      %1085 = vrot.lane.b32.xlu0 %v1030, 96
      %v1086 = vpop.permute.xlu0 %1085
      %v1095 = vsel %vm345, %v1040, %v1072
      %v1096 = vsel %vm345, %v1042, %v1074
      %v1097 = vsel %vm345, %v1044, %v1076
      %v1098 = vsel %vm345, %v1046, %v1078
      %v1099 = vsel %vm345, %v1048, %v1080
      %v1100 = vsel %vm345, %v1050, %v1082
      %v1101 = vsel %vm345, %v1052, %v1084
      %v1102 = vsel %vm345, %v1054, %v1086
      %v1103 = vmul.f32 %v1095, %v671
      %v1104 = vmul.f32 %v1096, %v671
      %v1105 = vmul.f32 %v1097, %v671
      %v1106 = vmul.f32 %v1098, %v671
      %v1107 = vmul.f32 %v1099, %v671
      %v1108 = vmul.f32 %v1100, %v671
      %v1109 = vmul.f32 %v1101, %v671
      %v1110 = vmul.f32 %v1102, %v671
      %v1111 = vadd.f32 %v1103, %v685
      %v1112 = vadd.f32 %v1104, %v685
      %v1113 = vadd.f32 %v1105, %v685
      %v1114 = vadd.f32 %v1106, %v685
      %v1115 = vadd.f32 %v1107, %v685
      %v1116 = vadd.f32 %v1108, %v685
      %v1117 = vadd.f32 %v1109, %v685
      %v1118 = vadd.f32 %v1110, %v685
      %1119 = vst.msk [vmem:[%s199] sm:$0xff] %vm213, %v687
      %1120 = vst.msk [vmem:[%s199 + $0x8] sm:$0xff] %vm213, %v1111
      %1121 = vst.msk [vmem:[%s199 + $0x10] sm:$0xff] %vm213, %v688
      %1122 = vst.msk [vmem:[%s199 + $0x18] sm:$0xff] %vm213, %v1112
      %1123 = vst.msk [vmem:[%s199 + $0x20] sm:$0xff] %vm213, %v689
      %1124 = vst.msk [vmem:[%s199 + $0x28] sm:$0xff] %vm213, %v1113
      %1125 = vst.msk [vmem:[%s199 + $0x30] sm:$0xff] %vm213, %v690
      %1126 = vst.msk [vmem:[%s199 + $0x38] sm:$0xff] %vm213, %v1114
      %1127 = vst.msk [vmem:[%s199 + $0x40] sm:$0xff] %vm213, %v691
      %1128 = vst.msk [vmem:[%s199 + $0x48] sm:$0xff] %vm213, %v1115
      %1129 = vst.msk [vmem:[%s199 + $0x50] sm:$0xff] %vm213, %v692
      %1130 = vst.msk [vmem:[%s199 + $0x58] sm:$0xff] %vm213, %v1116
      %1131 = vst.msk [vmem:[%s199 + $0x60] sm:$0xff] %vm213, %v693
      %1132 = vst.msk [vmem:[%s199 + $0x68] sm:$0xff] %vm213, %v1117
      %1133 = vst.msk [vmem:[%s199 + $0x70] sm:$0xff] %vm213, %v694
      %1134 = vst.msk [vmem:[%s199 + $0x78] sm:$0xff] %vm213, %v1118
      %s1135 = smul.u32 16, %s15
      %p1136 = scmp.lt.s32.totalorder %s1135, 31
      %s1137 = scalar_select %p1136, %s1135, 31
      %s1138 = smul.addr %s1137, 8
      %s1139 = scalar_lea.vmem %s4, %s1138
      // Predicated region
      $region37: #{tpu_custom_call.1} parent=35 // pred_check
        %p1140 = pneg %p122
      $region38: #{tpu_custom_call.1} parent=35 // pred_check_branch
        %1142 = sbr.rel (%p1140) target = $region40
      $region39: #{tpu_custom_call.1} parent=35 // pred_region
        %s1143 = smul.u32 16, %s15
      $region40: #{tpu_custom_call.1} parent=35 // pred_fallthru
        _
    $region36: #{tpu_custom_call.1} parent=5 // pred_fallthru
      _
    %p1144 = scmp.le.s32.totalorder 2, %s10
    // Predicated region
    $region41: #{tpu_custom_call.1} parent=5 // pred_check
      %p1145 = pneg %p1144
    $region42: #{tpu_custom_call.1} parent=5 // pred_check_branch
      %1147 = sbr.rel (%p1145) target = $region44
    $region43: #{tpu_custom_call.1} parent=5 // pred_region
      %s1148 = ssub.s32 %s10, 2
      // Predicated region
      $region45: #{tpu_custom_call.1} parent=43 // pred_check
        %p1149 = pneg %p128
      $region46: #{tpu_custom_call.1} parent=43 // pred_check_branch
        %1151 = sbr.rel (%p1149) target = $region48
      $region47: #{tpu_custom_call.1} parent=43 // pred_region
        %s1152 = smul.u32 16, %s16
        %p1153 = scmp.lt.s32.totalorder %s1152, 31
        %s1154 = scalar_select %p1153, %s1152, 31
        %s1155 = smul.addr %s1154, 8
        %s1156 = scalar_lea.vmem %s4, %s1155
      $region48: #{tpu_custom_call.1} parent=43 // pred_fallthru
        _
    $region44: #{tpu_custom_call.1} parent=5 // pred_fallthru
      _
  $region6: #{tpu_custom_call.1} parent=0 // loop_footer
    %s14 = sadd.s32 1, %s10
  $region7: #{tpu_custom_call.1} parent=0 // loop_footer_branch
    %9 = sbr.rel target = $region3
  $region8: #{tpu_custom_call.1} parent=0 // loop_exit
    _

</llo_original>
